<compile_context>
chip_gen: v7x
topology: tpu7x:2x2x1
jax: 0.10.0
libtpu: 0.0.40
codegen_flags: <defaults>
</compile_context>

<pallas_src>
import functools

import jax
import jax.numpy as jnp
from jax.experimental import pallas as pl
from jax.experimental.pallas import tpu as pltpu


def perceptron_kernel(x_ref, w1_ref, b1_ref, w2_ref, b2_ref, o_ref):
    # layer1: bf16 operands on the MXU, f32 accumulation.
    h = jnp.dot(x_ref[...], w1_ref[...], preferred_element_type=jnp.float32)
    h = h + b1_ref[...]                      # f32 bias add (VPU)
    # sigmoid = 1 / (1 + exp(-h)); exp and the approx reciprocal both land on
    # the otherwise-idle EUP slot instead of a VPU divide sequence.
    h = pl.reciprocal(1.0 + jnp.exp(-h), approx=True)
    # layer2: downcast activations to bf16 for the MXU, accumulate in f32.
    y = jnp.dot(h.astype(jnp.bfloat16), w2_ref[...],
                preferred_element_type=jnp.float32)
    y = y + b2_ref[...]
    o_ref[...] = y.astype(o_ref.dtype)       # single bf16 cast at the store


def _round_up(x, m):
    return (x + m - 1) // m * m


def prepare_params(w1, b1, w2, b2):
    """Pad / cast weights ONCE per parameter set (hoisted out of forward)."""
    in_features, hidden = w1.shape
    out_features = w2.shape[1]
    hid_p = _round_up(hidden, 128)
    out_p = _round_up(out_features, 128)

    # Matmul operands in bf16, biases in f32. Padded entries must stay exactly
    # zero (correctness of the padded-hidden handling depends on it).
    # TODO(synk): for bit-level parity with an f32 nn.Linear, feed f32 operands
    # (K=32 is cheap); bf16 operands keep the previously-reviewed numerics.
    w1_p = jnp.zeros((in_features, hid_p), jnp.bfloat16)
    w1_p = w1_p.at[:, :hidden].set(w1.astype(jnp.bfloat16))
    b1_p = jnp.zeros((1, hid_p), jnp.float32)
    b1_p = b1_p.at[:, :hidden].set(b1.astype(jnp.float32)[None, :])
    w2_p = jnp.zeros((hid_p, out_p), jnp.bfloat16)
    w2_p = w2_p.at[:hidden, :out_features].set(w2.astype(jnp.bfloat16))
    b2_p = jnp.zeros((1, out_p), jnp.float32)
    b2_p = b2_p.at[:, :out_features].set(b2.astype(jnp.float32)[None, :])
    return (w1_p, b1_p, w2_p, b2_p), out_features


@functools.partial(jax.jit, static_argnames=("out_features", "block_m"))
def perceptron_forward(x, params, *, out_features, block_m=1024):
    w1_p, b1_p, w2_p, b2_p = params
    B, in_features = x.shape
    hid_p = w1_p.shape[1]
    out_p = w2_p.shape[1]

    # Batch tile: multiple of 16 (bf16 row packing); large on single-TC
    # v5e/v6e to amortize per-step overhead; clamped so big batches keep >=4
    # grid steps for v7x's two TensorCores.
    bm = max(16, min(block_m, _round_up(-(-B // 4), 16)))
    B_p = _round_up(B, bm)

    x_bf = x.astype(jnp.bfloat16)            # no lane padding on x anymore
    if B_p != B:
        x_bf = jnp.zeros((B_p, in_features), jnp.bfloat16).at[:B].set(x_bf)

    vmem = pltpu.MemorySpace.VMEM
    out_padded = pl.pallas_call(
        perceptron_kernel,
        out_shape=jax.ShapeDtypeStruct((B_p, out_p), jnp.bfloat16),
        grid_spec=pltpu.PrefetchScalarGridSpec(
            num_scalar_prefetch=0,
            grid=(B_p // bm,),
            in_specs=[
                # x: tiled over the batch axis; last dim = full array extent.
                pl.BlockSpec((bm, in_features), lambda i: (i, 0),
                             memory_space=vmem),
                # Weights / biases: constant index_map -> fetched once, stay
                # VMEM-resident across grid steps.
                # TODO(synk): at real model sizes add pipeline_mode=pl.Buffered(1)
                # here to halve resident weight VMEM on v7x's 64 MiB budget.
                pl.BlockSpec((in_features, hid_p), lambda i: (0, 0),
                             memory_space=vmem),
                pl.BlockSpec((1, hid_p), lambda i: (0, 0), memory_space=vmem),
                pl.BlockSpec((hid_p, out_p), lambda i: (0, 0),
                             memory_space=vmem),
                pl.BlockSpec((1, out_p), lambda i: (0, 0), memory_space=vmem),
            ],
            out_specs=pl.BlockSpec((bm, out_p), lambda i: (i, 0),
                                   memory_space=vmem),
        ),
        compiler_params=pltpu.CompilerParams(
            dimension_semantics=("parallel",),
        ),
    )(x_bf, w1_p, b1_p, w2_p, b2_p)

    # Slice the lane-dense padded bf16 output back to the logical shape.
    return out_padded[:B, :out_features]


def reference_forward(x, w1, b1, w2, b2):
    # Numerically mirrors the kernel: bf16 matmul operands, f32 accumulation,
    # f32 bias add + sigmoid, bf16 output.
    h = jnp.dot(x.astype(jnp.bfloat16), w1.astype(jnp.bfloat16),
                preferred_element_type=jnp.float32) + b1
    h = jax.nn.sigmoid(h)
    y = jnp.dot(h.astype(jnp.bfloat16), w2.astype(jnp.bfloat16),
                preferred_element_type=jnp.float32) + b2
    return y.astype(jnp.bfloat16)


if __name__ == "__main__":
    # Small deterministic shapes: x [B, in], w1 [in, hidden], w2 [hidden, out].
    B, in_features, hidden_features, out_features = 8, 32, 64, 16

    key = jax.random.PRNGKey(0)
    k_x, k_w1, k_b1, k_w2, k_b2 = jax.random.split(key, 5)

    x = jax.random.normal(k_x, (B, in_features), dtype=jnp.float32)
    w1 = jax.random.normal(k_w1, (in_features, hidden_features), dtype=jnp.float32)
    b1 = jax.random.normal(k_b1, (hidden_features,), dtype=jnp.float32)
    w2 = jax.random.normal(k_w2, (hidden_features, out_features), dtype=jnp.float32)
    b2 = jax.random.normal(k_b2, (out_features,), dtype=jnp.float32)

    # Weight padding / casting happens once, outside the per-call path.
    params, out_f = prepare_params(w1, b1, w2, b2)

    # Small batch (single grid step).
    out = perceptron_forward(x, params, out_features=out_f)
    jax.block_until_ready(out)
    ref = reference_forward(x, w1, b1, w2, b2)
    assert out.shape == (B, out_features)
    assert out.dtype == jnp.bfloat16
    assert jnp.allclose(out.astype(jnp.float32), ref.astype(jnp.float32),
                        atol=5e-2, rtol=5e-2), "mismatch vs reference (small)"

    # Larger batch exercising the gridded / "parallel" batch axis (4 steps).
    B_big = 2048
    x_big = jax.random.normal(jax.random.PRNGKey(1), (B_big, in_features),
                              dtype=jnp.float32)
    out_big = perceptron_forward(x_big, params, out_features=out_f, block_m=1024)
    jax.block_until_ready(out_big)
    ref_big = reference_forward(x_big, w1, b1, w2, b2)
    assert out_big.shape == (B_big, out_features)
    assert jnp.allclose(out_big.astype(jnp.float32), ref_big.astype(jnp.float32),
                        atol=5e-2, rtol=5e-2), "mismatch vs reference (gridded)"

    print("KERNEL_OK")
</pallas_src>

<mosaic_0001>
module attributes {stable_mosaic.version = 11 : i64} {
  func.func @perceptron_kernel(%arg0: i32, %arg1: memref<16x32xbf16, #tpu.memory_space<vmem>>, %arg2: memref<32x128xbf16, #tpu.memory_space<vmem>>, %arg3: memref<1x128xf32, #tpu.memory_space<vmem>>, %arg4: memref<128x128xbf16, #tpu.memory_space<vmem>>, %arg5: memref<1x128xf32, #tpu.memory_space<vmem>>, %arg6: memref<16x128xbf16, #tpu.memory_space<vmem>>) attributes {dimension_semantics = [#tpu.dimension_semantics<parallel>], iteration_bounds = array<i64: 1>, scalar_prefetch = 0 : i64, scratch_operands = 0 : i64, tpu.core_type = #tpu.core_type<tc>, window_params = [{transform_indices = @transform_0, window_bounds = array<i64: 16, 32>}, {pipeline_mode = #tpu.pipeline_mode<synchronous>, transform_indices = @transform_1, window_bounds = array<i64: 32, 128>}, {pipeline_mode = #tpu.pipeline_mode<synchronous>, transform_indices = @transform_2, window_bounds = array<i64: 1, 128>}, {pipeline_mode = #tpu.pipeline_mode<synchronous>, transform_indices = @transform_3, window_bounds = array<i64: 128, 128>}, {pipeline_mode = #tpu.pipeline_mode<synchronous>, transform_indices = @transform_4, window_bounds = array<i64: 1, 128>}, {transform_indices = @transform_5, window_bounds = array<i64: 16, 128>}]} {
    %c0 = arith.constant 0 : index
    %c0_0 = arith.constant 0 : index
    %0 = vector.load %arg1[%c0, %c0_0] : memref<16x32xbf16, #tpu.memory_space<vmem>>, vector<16x32xbf16>
    %c0_1 = arith.constant 0 : index
    %c0_2 = arith.constant 0 : index
    %1 = vector.load %arg2[%c0_1, %c0_2] : memref<32x128xbf16, #tpu.memory_space<vmem>>, vector<32x128xbf16>
    %cst = arith.constant dense<0.000000e+00> : vector<16x128xf32>
    %2 = tpu.matmul %0, %1, %cst {dimension_numbers = #tpu.dot_dimension_numbers<[1], [0], [0], [1], [0, 0, 1, 1], [], []>} : vector<16x32xbf16>, vector<32x128xbf16>, vector<16x128xf32> -> vector<16x128xf32>
    %c0_3 = arith.constant 0 : index
    %c0_4 = arith.constant 0 : index
    %3 = vector.load %arg3[%c0_3, %c0_4] : memref<1x128xf32, #tpu.memory_space<vmem>>, vector<1x128xf32>
    %4 = vector.broadcast %3 : vector<1x128xf32> to vector<16x128xf32>
    %5 = arith.addf %2, %4 : vector<16x128xf32>
    %cst_5 = arith.constant 0.000000e+00 : f32
    %6 = vector.broadcast %cst_5 : f32 to vector<16x128xf32>
    %7 = arith.subf %6, %5 : vector<16x128xf32>
    %8 = math.exp %7 : vector<16x128xf32>
    %cst_6 = arith.constant 1.000000e+00 : f32
    %9 = vector.broadcast %cst_6 : f32 to vector<16x128xf32>
    %10 = arith.addf %9, %8 : vector<16x128xf32>
    %11 = tpu.reciprocal %10 {approx = true} : vector<16x128xf32> -> vector<16x128xf32>
    %12 = arith.truncf %11 : vector<16x128xf32> to vector<16x128xbf16>
    %c0_7 = arith.constant 0 : index
    %c0_8 = arith.constant 0 : index
    %13 = vector.load %arg4[%c0_7, %c0_8] : memref<128x128xbf16, #tpu.memory_space<vmem>>, vector<128x128xbf16>
    %cst_9 = arith.constant dense<0.000000e+00> : vector<16x128xf32>
    %14 = tpu.matmul %12, %13, %cst_9 {dimension_numbers = #tpu.dot_dimension_numbers<[1], [0], [0], [1], [0, 0, 1, 1], [], []>} : vector<16x128xbf16>, vector<128x128xbf16>, vector<16x128xf32> -> vector<16x128xf32>
    %c0_10 = arith.constant 0 : index
    %c0_11 = arith.constant 0 : index
    %15 = vector.load %arg5[%c0_10, %c0_11] : memref<1x128xf32, #tpu.memory_space<vmem>>, vector<1x128xf32>
    %16 = vector.broadcast %15 : vector<1x128xf32> to vector<16x128xf32>
    %17 = arith.addf %14, %16 : vector<16x128xf32>
    %18 = arith.truncf %17 : vector<16x128xf32> to vector<16x128xbf16>
    %c0_12 = arith.constant 0 : index
    %c0_13 = arith.constant 0 : index
    %19 = vector.load %arg6[%c0_12, %c0_13] : memref<16x128xbf16, #tpu.memory_space<vmem>>, vector<16x128xbf16>
    tpu.vector_store %arg6[%c0_12, %c0_13], %18 {strides = array<i32>} : memref<16x128xbf16, #tpu.memory_space<vmem>>, vector<16x128xbf16>,
    return
  }
  func.func @transform_0(%arg0: i32) -> (i32, i32) {
    %c0_i32 = arith.constant 0 : i32
    %c0_i32_0 = arith.constant 0 : i32
    return %arg0, %c0_i32 : i32, i32
  }
  func.func @transform_1(%arg0: i32) -> (i32, i32) {
    %c0_i32 = arith.constant 0 : i32
    %c0_i32_0 = arith.constant 0 : i32
    %c0_i32_1 = arith.constant 0 : i32
    return %c0_i32, %c0_i32_0 : i32, i32
  }
  func.func @transform_2(%arg0: i32) -> (i32, i32) {
    %c0_i32 = arith.constant 0 : i32
    %c0_i32_0 = arith.constant 0 : i32
    %c0_i32_1 = arith.constant 0 : i32
    return %c0_i32, %c0_i32_0 : i32, i32
  }
  func.func @transform_3(%arg0: i32) -> (i32, i32) {
    %c0_i32 = arith.constant 0 : i32
    %c0_i32_0 = arith.constant 0 : i32
    %c0_i32_1 = arith.constant 0 : i32
    return %c0_i32, %c0_i32_0 : i32, i32
  }
  func.func @transform_4(%arg0: i32) -> (i32, i32) {
    %c0_i32 = arith.constant 0 : i32
    %c0_i32_0 = arith.constant 0 : i32
    %c0_i32_1 = arith.constant 0 : i32
    return %c0_i32, %c0_i32_0 : i32, i32
  }
  func.func @transform_5(%arg0: i32) -> (i32, i32) {
    %c0_i32 = arith.constant 0 : i32
    %c0_i32_0 = arith.constant 0 : i32
    return %arg0, %c0_i32 : i32, i32
  }
}

</mosaic_0001>

<llo_original>
// kernel: perceptron_forward.1
$region0: #{perceptron_forward.1}
  #allocation0 [shape = 'u32[]', space=smem, size = 0x4, offset = 0x4, fixed_abs, tag = 'smem constant byte address 0x4 - core index']
  #allocation1 [shape = 'u32[144,128]{1,0:T(1,128)}', space=vmem, size = 0x12000, scoped, tag = 'internal scratch']
  %s0 = inlined_call_operand.vmem [shape: bf16[16,32], index: 0, kind: input, shape index: {}]
  %s1 = inlined_call_operand.vmem [shape: bf16[32,128], index: 1, kind: input, shape index: {}]
  %s2 = inlined_call_operand.vmem [shape: f32[1,128], index: 2, kind: input, shape index: {}]
  %s3 = inlined_call_operand.hbm [shape: bf16[128,128], index: 3, kind: input, shape index: {}]
  %s4 = inlined_call_operand.vmem [shape: f32[1,128], index: 4, kind: input, shape index: {}]
  %s5 = inlined_call_operand.vmem [shape: bf16[16,128], index: 5, kind: output, shape index: {}]
  %s6 = sld [smem:[#allocation0]]
  $region34: #{perceptron_forward.1} parent=0
    _
  %s8 = ssub.s32 1, %s6
  %s9 = scalar_select 0, %s8, %s6
  $region1: #{perceptron_forward.1} parent=0
    #allocation2 [shape = 'u8[32768]{0}', space=vmem, size = 0x8000, scoped, tag = 'input window, operand 3, single buffered']
    #allocation3 [shape = 's32[1]{0}', space=sflag, size = 0x4, scoped, tag = 'scoped memory for perceptron_forward.1']
    %10 = vsyncpa [#allocation3], 0
    // Predicated region
    $region2: #{perceptron_forward.1} parent=1 // pred_check
      _
    $region3: #{perceptron_forward.1} parent=1 // pred_check_branch
      %12 = sbr.rel (0) target = $region5
    $region4: #{perceptron_forward.1} parent=1 // pred_region
      _
    $region5: #{perceptron_forward.1} parent=1 // pred_fallthru
      _
    // Predicated region
    $region6: #{perceptron_forward.1} parent=1 // pred_check
      _
    $region7: #{perceptron_forward.1} parent=1 // pred_check_branch
      %14 = sbr.rel (0) target = $region9
    $region8: #{perceptron_forward.1} parent=1 // pred_region
      _
    $region9: #{perceptron_forward.1} parent=1 // pred_fallthru
      _
    // Predicated region
    $region10: #{perceptron_forward.1} parent=1 // pred_check
      _
    $region11: #{perceptron_forward.1} parent=1 // pred_check_branch
      %16 = sbr.rel (0) target = $region13
    $region12: #{perceptron_forward.1} parent=1 // pred_region
      _
    $region13: #{perceptron_forward.1} parent=1 // pred_fallthru
      _
    // Predicated region
    $region14: #{perceptron_forward.1} parent=1 // pred_check
      _
    $region15: #{perceptron_forward.1} parent=1 // pred_check_branch
      %18 = sbr.rel (0) target = $region17
    $region16: #{perceptron_forward.1} parent=1 // pred_region
      %s20 = ssub.s32 1024, 1024
      %21 = vsyncadd [#allocation3], %s20
      %s22 = sshll.u32 [#allocation2], 4
      %s23 = int_to_ptr.vmem [resolvable:$true] %s22
      %28 = dma.hbm_to_vmem [thread:$0]  %s3, 1024, %s23, [#allocation3], 64, 64, 4
    $region17: #{perceptron_forward.1} parent=1 // pred_fallthru
      _
    // Predicated region
    $region18: #{perceptron_forward.1} parent=1 // pred_check
      _
    $region19: #{perceptron_forward.1} parent=1 // pred_check_branch
      %30 = sbr.rel (0) target = $region21
    $region20: #{perceptron_forward.1} parent=1 // pred_region
      _
    $region21: #{perceptron_forward.1} parent=1 // pred_fallthru
      _
    // Predicated region
    $region22: #{perceptron_forward.1} parent=1 // pred_check
      _
    $region23: #{perceptron_forward.1} parent=1 // pred_check_branch
      %32 = sbr.rel (0) target = $region25
    $region24: #{perceptron_forward.1} parent=1 // pred_region
      %33 = dma.done [#allocation3], 1024
    $region25: #{perceptron_forward.1} parent=1 // pred_fallthru
      _
    %v35 = vld [vmem:[%s0] sm:$0xf]
    %v36 = vld [vmem:[%s0 + $0x4] sm:$0xf]
    %v37 = vld [vmem:[%s1] sm:$0xf]
    %v38 = vld [vmem:[%s1 + $0x4] sm:$0xf]
    %v39 = vld [vmem:[%s1 + $0x8] sm:$0xf]
    %v40 = vld [vmem:[%s1 + $0xc] sm:$0xf]
    %v41 = vld [vmem:[%s2] sm:$0x1]
    %v43 = vlaneseq
    %v44 = vshrl.u32 %v43, 7
    %v45 = vsub.s32 0, %v44
    %v46 = vrot.slane %v41, %v45
    %v50 = vunpack.c.l.b16 %v35
    %v51 = vunpack.c.l.b16 %v36
    %v52 = vpack.c.b16 %v51, %v50
    %v57 = vunpack.c.l.b16 %v37
    %v58 = vunpack.c.l.b16 %v38
    %v59 = vunpack.c.l.b16 %v39
    %v60 = vunpack.c.l.b16 %v40
    %v61 = vpack.c.b16 %v58, %v57
    %v62 = vpack.c.b16 %v60, %v59
    %vm65 = vcmask 261120
    %v67 = vsel %vm65, %v52, 0
    %69 = vmatprep.subr.bf16.mxu0 0
    %70 = vmatpush1.bf16.msra.mxu0 %v61
    %71 = vmatprep.subr.bf16.mxu0 0
    %72 = vmatpush1.bf16.msra.mxu0 %v62
    %73 = vmatprep.subr.bf16.mxu0 0
    %74 = vmatpush1.bf16.msra.mxu0 0
    %75 = vmatprep.subr.bf16.mxu0 0
    %76 = vmatpush1.bf16.msra.mxu0 0
    %77 = vmatprep.subr.bf16.mxu0 0
    %78 = vmatpush1.bf16.msra.mxu0 0
    %79 = vmatprep.subr.bf16.mxu0 0
    %80 = vmatpush1.bf16.msra.mxu0 0
    %81 = vmatprep.subr.bf16.mxu0 0
    %82 = vmatpush1.bf16.msra.mxu0 0
    %83 = vmatprep.subr.bf16.mxu0 0
    %84 = vmatpush1.bf16.msra.mxu0 0
    %85 = vmatprep.subr.bf16.mxu0 0
    %86 = vmatpush1.bf16.msra.mxu0 0
    %87 = vmatprep.subr.bf16.mxu0 0
    %88 = vmatpush1.bf16.msra.mxu0 0
    %89 = vmatprep.subr.bf16.mxu0 0
    %90 = vmatpush1.bf16.msra.mxu0 0
    %91 = vmatprep.subr.bf16.mxu0 0
    %92 = vmatpush1.bf16.msra.mxu0 0
    %93 = vmatprep.subr.bf16.mxu0 0
    %94 = vmatpush1.bf16.msra.mxu0 0
    %95 = vmatprep.subr.bf16.mxu0 0
    %96 = vmatpush1.bf16.msra.mxu0 0
    %97 = vmatprep.subr.bf16.mxu0 0
    %98 = vmatpush1.bf16.msra.mxu0 0
    %99 = vmatprep.subr.bf16.mxu0 0
    %100 = vmatpush1.bf16.msra.mxu0 0
    %101 = vmatprep.mubr.bf16.mxu0 0
    %102 = vmatmul.mubr.bf16.gmra.mrb[0].mxu0 %v67
    %v103 = vpop.f32.mrb[0].mxu0
    %v104 = vadd.f32 %v46, %v103
    %v105 = vpop.f32.mrb[0].mxu0
    %v106 = vpop.f32.mrb[0].mxu0
    %v107 = vadd.f32 %v46, %v106
    %v108 = vpop.f32.mrb[0].mxu0
    %109 = vdwg.mxu0
    %v110 = vsub.f32 0.0, %v104
    %v111 = vsub.f32 0.0, %v107
    %v112 = vmul.f32 %v110, 1.442695
    %v113 = vpow.pop %v112
    %v114 = vmul.f32 %v111, 1.442695
    %v115 = vpow.pop %v114
    %v116 = vadd.f32 %v113, 1.0
    %v117 = vadd.f32 %v115, 1.0
    %v118 = vrcp.pop %v116
    %v119 = vrcp.pop %v117
    %v120 = vpack.c.bf16 %v119, %v118
    %v121 = vld [vmem:[#allocation2] sm:$0xf]
    %v122 = vld [vmem:[#allocation2 + $0x4] sm:$0xf]
    %v123 = vld [vmem:[#allocation2 + $0x8] sm:$0xf]
    %v124 = vld [vmem:[#allocation2 + $0xc] sm:$0xf]
    %v125 = vld [vmem:[#allocation2 + $0x10] sm:$0xf]
    %v126 = vld [vmem:[#allocation2 + $0x14] sm:$0xf]
    %v127 = vld [vmem:[#allocation2 + $0x18] sm:$0xf]
    %v128 = vld [vmem:[#allocation2 + $0x1c] sm:$0xf]
    %v129 = vld [vmem:[#allocation2 + $0x20] sm:$0xf]
    %v130 = vld [vmem:[#allocation2 + $0x24] sm:$0xf]
    %v131 = vld [vmem:[#allocation2 + $0x28] sm:$0xf]
    %v132 = vld [vmem:[#allocation2 + $0x2c] sm:$0xf]
    %v133 = vld [vmem:[#allocation2 + $0x30] sm:$0xf]
    %v134 = vld [vmem:[#allocation2 + $0x34] sm:$0xf]
    %v135 = vld [vmem:[#allocation2 + $0x38] sm:$0xf]
    %v136 = vld [vmem:[#allocation2 + $0x3c] sm:$0xf]
    %v137 = vld [vmem:[%s4] sm:$0x1]
    %v139 = vlaneseq
    %v140 = vshrl.u32 %v139, 7
    %v141 = vsub.s32 0, %v140
    %v142 = vrot.slane %v137, %v141
    %v160 = vunpack.c.l.b16 %v121
    %v161 = vunpack.c.l.b16 %v122
    %v162 = vunpack.c.l.b16 %v123
    %v163 = vunpack.c.l.b16 %v124
    %v164 = vunpack.c.l.b16 %v125
    %v165 = vunpack.c.l.b16 %v126
    %v166 = vunpack.c.l.b16 %v127
    %v167 = vunpack.c.l.b16 %v128
    %v168 = vunpack.c.l.b16 %v129
    %v169 = vunpack.c.l.b16 %v130
    %v170 = vunpack.c.l.b16 %v131
    %v171 = vunpack.c.l.b16 %v132
    %v172 = vunpack.c.l.b16 %v133
    %v173 = vunpack.c.l.b16 %v134
    %v174 = vunpack.c.l.b16 %v135
    %v175 = vunpack.c.l.b16 %v136
    %v176 = vpack.c.b16 %v161, %v160
    %v177 = vpack.c.b16 %v163, %v162
    %v178 = vpack.c.b16 %v165, %v164
    %v179 = vpack.c.b16 %v167, %v166
    %v180 = vpack.c.b16 %v169, %v168
    %v181 = vpack.c.b16 %v171, %v170
    %v182 = vpack.c.b16 %v173, %v172
    %v183 = vpack.c.b16 %v175, %v174
    %192 = vmatprep.subr.bf16.mxu0 0
    %193 = vmatpush1.bf16.msra.mxu0 %v176
    %194 = vmatprep.subr.bf16.mxu0 0
    %195 = vmatpush1.bf16.msra.mxu0 %v177
    %196 = vmatprep.subr.bf16.mxu0 0
    %197 = vmatpush1.bf16.msra.mxu0 %v178
    %198 = vmatprep.subr.bf16.mxu0 0
    %199 = vmatpush1.bf16.msra.mxu0 %v179
    %200 = vmatprep.subr.bf16.mxu0 0
    %201 = vmatpush1.bf16.msra.mxu0 %v180
    %202 = vmatprep.subr.bf16.mxu0 0
    %203 = vmatpush1.bf16.msra.mxu0 %v181
    %204 = vmatprep.subr.bf16.mxu0 0
    %205 = vmatpush1.bf16.msra.mxu0 %v182
    %206 = vmatprep.subr.bf16.mxu0 0
    %207 = vmatpush1.bf16.msra.mxu0 %v183
    %208 = vmatprep.subr.bf16.mxu0 0
    %209 = vmatpush1.bf16.msra.mxu0 0
    %210 = vmatprep.subr.bf16.mxu0 0
    %211 = vmatpush1.bf16.msra.mxu0 0
    %212 = vmatprep.subr.bf16.mxu0 0
    %213 = vmatpush1.bf16.msra.mxu0 0
    %214 = vmatprep.subr.bf16.mxu0 0
    %215 = vmatpush1.bf16.msra.mxu0 0
    %216 = vmatprep.subr.bf16.mxu0 0
    %217 = vmatpush1.bf16.msra.mxu0 0
    %218 = vmatprep.subr.bf16.mxu0 0
    %219 = vmatpush1.bf16.msra.mxu0 0
    %220 = vmatprep.subr.bf16.mxu0 0
    %221 = vmatpush1.bf16.msra.mxu0 0
    %222 = vmatprep.subr.bf16.mxu0 0
    %223 = vmatpush1.bf16.msra.mxu0 0
    %224 = vmatprep.mubr.bf16.mxu0 0
    %225 = vmatmul.mubr.bf16.gmra.mrb[0].mxu0 %v120
    %v226 = vpop.f32.mrb[0].mxu0
    %v227 = vadd.f32 %v142, %v226
    %v228 = vpop.f32.mrb[0].mxu0
    %v229 = vpop.f32.mrb[0].mxu0
    %v230 = vadd.f32 %v142, %v229
    %v231 = vpop.f32.mrb[0].mxu0
    %232 = vdwg.mxu0
    %v233 = vpack.c.bf16 %v230, %v227
    %v235 = vunpack.c.l.b16 %v233
    %v236 = vunpack.c.h.b16 %v233
    %v237 = vpack.c.b16 %v235, %v235
    %v238 = vpack.c.b16 %v236, %v236
    %241 = vst [vmem:[%s5] sm:$0xf] %v237
    %242 = vst [vmem:[%s5 + $0x4] sm:$0xf] %v238
    // Predicated region
    $region26: #{perceptron_forward.1} parent=1 // pred_check
      _
    $region27: #{perceptron_forward.1} parent=1 // pred_check_branch
      %244 = sbr.rel (0) target = $region29
    $region28: #{perceptron_forward.1} parent=1 // pred_region
      _
    $region29: #{perceptron_forward.1} parent=1 // pred_fallthru
      _
    // Predicated region
    $region30: #{perceptron_forward.1} parent=1 // pred_check
      _
    $region31: #{perceptron_forward.1} parent=1 // pred_check_branch
      %246 = sbr.rel (0) target = $region33
    $region32: #{perceptron_forward.1} parent=1 // pred_region
      _
    $region33: #{perceptron_forward.1} parent=1 // pred_fallthru
      _
    %247 = vsyncpa [#allocation3], 1

</llo_original>
